<compile_context>
chip_gen: v7x
topology: tpu7x:2x2x1
jax: 0.10.0
libtpu: 0.0.40
codegen_flags: <defaults>
</compile_context>

<pallas_src>
import jax
import jax.numpy as jnp
from jax.experimental import pallas as pl
from jax.experimental.pallas import tpu as pltpu


# ---------------------------------------------------------------------------
# Kernels
# ---------------------------------------------------------------------------

def _log_softmax_store(logits_f32, o_ref):
    """Numerically-stable log-softmax over the (size-2) class axis + store."""
    m = jnp.max(logits_f32, axis=-1, keepdims=True)
    shifted = logits_f32 - m
    lse = jnp.log(jnp.sum(jnp.exp(shifted), axis=-1, keepdims=True))
    o_ref[...] = (shifted - lse).astype(o_ref.dtype)


def nsp_kernel(x_ref, w_ref, b_ref, o_ref):
    # x_ref: [tb, H]   w_ref: [H, 2]   b_ref: [1, 2] (f32)   o_ref: [tb, 2]
    logits = (
        jnp.dot(x_ref[...], w_ref[...], preferred_element_type=jnp.float32)
        + b_ref[...]
    )
    _log_softmax_store(logits, o_ref)


def nsp_gather_kernel(x_hbm_ref, w_ref, b_ref, o_ref, xbuf, sem):
    # x_hbm_ref: [B, S, H] left in HBM.  Strided DMA gathers only the CLS
    # rows (B rows of H contiguous elements, stride S*H) into VMEM scratch.
    cp = pltpu.make_async_copy(x_hbm_ref.at[:, 0, :], xbuf, sem)
    cp.start()
    cp.wait()
    logits = (
        jnp.dot(xbuf[...], w_ref[...], preferred_element_type=jnp.float32)
        + b_ref[...]
    )
    _log_softmax_store(logits, o_ref)


# ---------------------------------------------------------------------------
# Wrapper
# ---------------------------------------------------------------------------

def _round_up(x, m):
    return ((x + m - 1) // m) * m


def _default_batch_splits():
    """2 on v7x (two TensorCores/chip -> shard the batch across them),
    1 on single-TC chips (v5e/v6e) to keep the grid-step count minimal."""
    try:
        kind = jax.devices()[0].device_kind.lower()
    except Exception:
        return 1
    return 2 if ("v7" in kind or "tpu7" in kind) else 1


def next_sentence_prediction(inp, weight, bias, *, tb=512, num_batch_splits=None):
    """BERT NSP head.

    inp:    [B, S, H] activations (f32 or bf16)
    weight: [H, 2]    (transpose of torch nn.Linear(hidden, 2).weight)
    bias:   [2]
    Returns [B, 2] log-probabilities in inp.dtype.
    """
    B, S, H = inp.shape
    out_dtype = inp.dtype
    isz = inp.dtype.itemsize
    b2d = bias.reshape(1, 2).astype(jnp.float32)  # tiny; always add in f32

    n_splits = _default_batch_splits() if num_batch_splits is None else num_batch_splits
    n_splits = max(1, int(n_splits))

    cost = pl.CostEstimate(
        flops=2 * B * H * 2 + 8 * B,
        transcendentals=3 * B,
        bytes_accessed=(B * H * isz + H * 2 * weight.dtype.itemsize + 2 * 4
                        + B * 2 * out_dtype.itemsize),
    )

    if S == 1 or H % 128 == 0:
        # ------- fast path: fused CLS gather via a BlockSpec window -------
        x2d = jnp.reshape(inp, (B, S * H))  # free metadata reshape

        # sublane alignment of the batch tile: 8 rows (f32), 16 rows (bf16).
        row_align = max(8, 32 // isz)
        split_rows = _round_up(pl.cdiv(B, n_splits), row_align) if n_splits > 1 else B
        tb_eff = min(_round_up(tb, row_align), split_rows)
        if tb_eff >= B:
            tb_eff = B                       # one full-batch block (grid == 1)
        grid = (pl.cdiv(B, tb_eff),)

        compiler_kwargs = dict(dimension_semantics=("parallel",))
        # Only override scoped VMEM when a big tile actually needs it
        # (v5e default limit is 16 MiB; v6e/v7x default 32 MiB).
        vmem_need = 2 * tb_eff * H * isz + 2 * H * 128 * 4 + (1 << 20)
        if vmem_need > 12 * 1024 * 1024:
            compiler_kwargs["vmem_limit_bytes"] = min(2 * vmem_need, 100 * 1024 * 1024)

        return pl.pallas_call(
            nsp_kernel,
            out_shape=jax.ShapeDtypeStruct((B, 2), out_dtype),
            grid=grid,
            in_specs=[
                pl.BlockSpec((tb_eff, H), lambda i: (i, 0)),  # CLS lanes of tile
                pl.BlockSpec((H, 2), lambda i: (0, 0)),       # resident weight
                pl.BlockSpec((1, 2), lambda i: (0, 0)),       # resident bias
            ],
            out_specs=pl.BlockSpec((tb_eff, 2), lambda i: (i, 0)),
            compiler_params=pltpu.CompilerParams(**compiler_kwargs),
            cost_estimate=cost,
        )(x2d, weight, b2d)

    # ------- unaligned-H path: in-kernel strided DMA gather of CLS rows -------
    # Single grid step: the whole CLS slab is only B*H*isz bytes, so per-step
    # overhead would dominate any further tiling.
    return pl.pallas_call(
        nsp_gather_kernel,
        out_shape=jax.ShapeDtypeStruct((B, 2), out_dtype),
        grid=(1,),
        in_specs=[
            pl.BlockSpec(memory_space=pl.ANY),            # [B,S,H] stays in HBM
            pl.BlockSpec((H, 2), lambda i: (0, 0)),       # resident weight
            pl.BlockSpec((1, 2), lambda i: (0, 0)),       # resident bias
        ],
        out_specs=pl.BlockSpec((B, 2), lambda i: (0, 0)),
        scratch_shapes=[
            pltpu.VMEM((B, H), inp.dtype),                # gathered CLS rows
            pltpu.SemaphoreType.DMA,
        ],
        compiler_params=pltpu.CompilerParams(dimension_semantics=("arbitrary",)),
        cost_estimate=cost,
    )(inp, weight, b2d)


# ---------------------------------------------------------------------------
# Reference + smoke test
# ---------------------------------------------------------------------------

def reference(inp, weight, bias):
    x = inp[:, 0, :].astype(jnp.float32)
    logits = x @ weight.astype(jnp.float32) + bias.astype(jnp.float32)
    return jax.nn.log_softmax(logits, axis=-1)


if __name__ == "__main__":
    key = jax.random.PRNGKey(0)
    k_in, k_w, k_b, k_in2, k_w2 = jax.random.split(key, 5)

    # --- aligned path (H % 128 == 0): fused CLS gather via BlockSpec window ---
    B, S, H = 48, 8, 128
    inp = jax.random.normal(k_in, (B, S, H), dtype=jnp.float32)
    weight = jax.random.normal(k_w, (H, 2), dtype=jnp.float32) * (1.0 / H ** 0.5)
    bias = jax.random.normal(k_b, (2,), dtype=jnp.float32) * 0.01

    # tb=16 exercises a multi-step pipelined grid.
    out = jax.block_until_ready(next_sentence_prediction(inp, weight, bias, tb=16))
    ref = reference(inp, weight, bias)
    assert out.shape == (B, 2)
    assert jnp.allclose(out, ref, atol=2e-2, rtol=2e-2)

    # default tb -> grid=1 on v5e/v6e, 2-way batch split on v7x.
    out_d = jax.block_until_ready(next_sentence_prediction(inp, weight, bias))
    assert jnp.allclose(out_d, ref, atol=2e-2, rtol=2e-2)

    # bf16 activations + weights (halves the dominant B*H HBM read).
    out_bf = jax.block_until_ready(
        next_sentence_prediction(inp.astype(jnp.bfloat16),
                                 weight.astype(jnp.bfloat16), bias))
    ref_bf = reference(inp.astype(jnp.bfloat16).astype(jnp.float32),
                       weight.astype(jnp.bfloat16).astype(jnp.float32), bias)
    assert out_bf.dtype == jnp.bfloat16
    assert jnp.allclose(out_bf.astype(jnp.float32), ref_bf, atol=6e-2, rtol=6e-2)

    # --- unaligned path (H % 128 != 0): in-kernel strided DMA gather ---
    B2, S2, H2 = 12, 4, 96
    inp2 = jax.random.normal(k_in2, (B2, S2, H2), dtype=jnp.float32)
    w2 = jax.random.normal(k_w2, (H2, 2), dtype=jnp.float32) * (1.0 / H2 ** 0.5)
    out2 = jax.block_until_ready(next_sentence_prediction(inp2, w2, bias))
    ref2 = reference(inp2, w2, bias)
    assert out2.shape == (B2, 2)
    assert jnp.allclose(out2, ref2, atol=2e-2, rtol=2e-2)

    print("KERNEL_OK")
</pallas_src>

<mosaic_0001>
module attributes {stable_mosaic.version = 11 : i64} {
  func.func @nsp_kernel(%arg0: i32, %arg1: memref<16x128xf32, #tpu.memory_space<vmem>>, %arg2: memref<128x2xf32, #tpu.memory_space<vmem>>, %arg3: memref<1x2xf32, #tpu.memory_space<vmem>>, %arg4: memref<16x2xf32, #tpu.memory_space<vmem>>) attributes {dimension_semantics = [#tpu.dimension_semantics<parallel>], iteration_bounds = array<i64: 3>, scalar_prefetch = 0 : i64, scratch_operands = 0 : i64, tpu.core_type = #tpu.core_type<tc>, window_params = [{transform_indices = @transform_0, window_bounds = array<i64: 16, 128>}, {pipeline_mode = #tpu.pipeline_mode<synchronous>, transform_indices = @transform_1, window_bounds = array<i64: 128, 2>}, {pipeline_mode = #tpu.pipeline_mode<synchronous>, transform_indices = @transform_2, window_bounds = array<i64: 1, 2>}, {transform_indices = @transform_3, window_bounds = array<i64: 16, 2>}]} {
    %c0 = arith.constant 0 : index
    %c0_0 = arith.constant 0 : index
    %0 = vector.load %arg1[%c0, %c0_0] : memref<16x128xf32, #tpu.memory_space<vmem>>, vector<16x128xf32>
    %c0_1 = arith.constant 0 : index
    %c0_2 = arith.constant 0 : index
    %1 = vector.load %arg2[%c0_1, %c0_2] : memref<128x2xf32, #tpu.memory_space<vmem>>, vector<128x2xf32>
    %cst = arith.constant dense<0.000000e+00> : vector<16x2xf32>
    %2 = tpu.matmul %0, %1, %cst {dimension_numbers = #tpu.dot_dimension_numbers<[1], [0], [0], [1], [0, 0, 1, 1], [], []>} : vector<16x128xf32>, vector<128x2xf32>, vector<16x2xf32> -> vector<16x2xf32>
    %c0_3 = arith.constant 0 : index
    %c0_4 = arith.constant 0 : index
    %3 = vector.load %arg3[%c0_3, %c0_4] : memref<1x2xf32, #tpu.memory_space<vmem>>, vector<1x2xf32>
    %4 = vector.broadcast %3 : vector<1x2xf32> to vector<16x2xf32>
    %5 = arith.addf %2, %4 : vector<16x2xf32>
    %cst_5 = arith.constant dense<0xFF800000> : vector<16xf32>
    %6 = vector.multi_reduction <maximumf>, %5, %cst_5 [1] : vector<16x2xf32> to vector<16xf32>
    %7 = vector.shape_cast %6 : vector<16xf32> to vector<16x1xf32>
    %8 = vector.broadcast %7 : vector<16x1xf32> to vector<16x2xf32>
    %9 = arith.subf %5, %8 : vector<16x2xf32>
    %10 = math.exp %9 : vector<16x2xf32>
    %cst_6 = arith.constant dense<0.000000e+00> : vector<16xf32>
    %11 = vector.multi_reduction <add>, %10, %cst_6 [1] : vector<16x2xf32> to vector<16xf32>
    %12 = vector.shape_cast %11 : vector<16xf32> to vector<16x1xf32>
    %13 = math.log %12 : vector<16x1xf32>
    %14 = vector.broadcast %13 : vector<16x1xf32> to vector<16x2xf32>
    %15 = arith.subf %9, %14 : vector<16x2xf32>
    %c0_7 = arith.constant 0 : index
    %c0_8 = arith.constant 0 : index
    %16 = vector.load %arg4[%c0_7, %c0_8] : memref<16x2xf32, #tpu.memory_space<vmem>>, vector<16x2xf32>
    tpu.vector_store %arg4[%c0_7, %c0_8], %15 {strides = array<i32>} : memref<16x2xf32, #tpu.memory_space<vmem>>, vector<16x2xf32>,
    return
  }
  func.func @transform_0(%arg0: i32) -> (i32, i32) {
    %c0_i32 = arith.constant 0 : i32
    %c0_i32_0 = arith.constant 0 : i32
    return %arg0, %c0_i32 : i32, i32
  }
  func.func @transform_1(%arg0: i32) -> (i32, i32) {
    %c0_i32 = arith.constant 0 : i32
    %c0_i32_0 = arith.constant 0 : i32
    %c0_i32_1 = arith.constant 0 : i32
    return %c0_i32, %c0_i32_0 : i32, i32
  }
  func.func @transform_2(%arg0: i32) -> (i32, i32) {
    %c0_i32 = arith.constant 0 : i32
    %c0_i32_0 = arith.constant 0 : i32
    %c0_i32_1 = arith.constant 0 : i32
    return %c0_i32, %c0_i32_0 : i32, i32
  }
  func.func @transform_3(%arg0: i32) -> (i32, i32) {
    %c0_i32 = arith.constant 0 : i32
    %c0_i32_0 = arith.constant 0 : i32
    return %arg0, %c0_i32 : i32, i32
  }
}

</mosaic_0001>

<llo_original>
// kernel: tpu_custom_call.1
$region0: #{tpu_custom_call.1}
  #allocation0 [shape = 'u32[]', space=smem, size = 0x4, offset = 0x4, fixed_abs, tag = 'smem constant byte address 0x4 - core index']
  #allocation1 [shape = 'u32[144,128]{1,0:T(1,128)}', space=vmem, size = 0x12000, scoped, tag = 'internal scratch']
  %s0 = inlined_call_operand.hbm [shape: f32[48,1024], index: 0, kind: input, shape index: {}]
  %s1 = inlined_call_operand.vmem [shape: f32[128,2], index: 1, kind: input, shape index: {}]
  %s2 = inlined_call_operand.vmem [shape: f32[1,2], index: 2, kind: input, shape index: {}]
  %s3 = inlined_call_operand.vmem [shape: f32[48,2], index: 3, kind: output, shape index: {}]
  %s4 = sld [smem:[#allocation0]]
  $region49: #{tpu_custom_call.1} parent=0
    _
  %s6 = ssub.s32 1, %s4
  %s7 = scalar_select 0, %s6, %s4
  $region1: #{tpu_custom_call.1} parent=0
    #allocation2 [shape = 'u8[16384]{0}', space=vmem, size = 0x4000, scoped, tag = 'input window, operand 0']
    #allocation3 [shape = 's32[2]{0}', space=sflag, size = 0x8, scoped, tag = 'scoped memory for tpu_custom_call.1']
    %8 = vsyncpa [#allocation3], 0
    %s9 = scalar_lea.sflag [#allocation3], 1
    %10 = vsyncpa %s9, 0
    loop: start=0, step=1, limit=5
    $region2: #{tpu_custom_call.1} parent=1 // loop_pre_header
      _
    $region3: #{tpu_custom_call.1} parent=1 // loop_header
      %s12 = sphi 0, %s16
      %p13 = scmp.ge.s32.totalorder %s12, 5
      %s22 = sphi 0, %s24
      %s25 = sphi 0, %s22
      %s26 = sphi 0, %s25
      %s42 = sphi 0, %s26
      %s46 = sphi 0, %s46
      %s48 = sphi 0, %s46
      %s49 = sphi 0, %s48
      %s63 = sphi 0, %s49
      %s67 = sphi 0, %s67
      %s69 = sphi 0, %s67
      %s70 = sphi 0, %s69
      %s84 = sphi 0, %s70
      %s90 = sphi 0, %s92
      %s93 = sphi 0, %s90
      %s94 = sphi 0, %s93
      %s110 = sphi 0, %s94
    $region4: #{tpu_custom_call.1} parent=1 // loop_header_branch
      %15 = sbr.rel (%p13) target = $region8
    $region5: #{tpu_custom_call.1} parent=1 // loop_body
      %s17 = ssub.s32 %s12, 1
      %s18 = ssub.s32 %s12, 2
      %s19 = sadd.s32 %s12, 1
      %s20 = ssub.s32 %s12, %s19
      %p21 = scmp.eq.s32.totalorder %s20, 0
      %s23 = sadd.s32 %s22, 1
      %s24 = scalar_select %p21, %s22, %s23
      %p27 = pneg %p21
      %p28 = scmp.eq.s32.totalorder %s12, 2
      %p29 = por %p27, %p28
      %p30 = scmp.ne.s32.totalorder %s22, %s25
      %p31 = scmp.eq.s32.totalorder %s12, 0
      %p32 = por %p30, %p31
      %p33 = scmp.ne.s32.totalorder %s22, %s25
      %p34 = scmp.eq.s32.totalorder %s17, 2
      %p35 = por %p33, %p34
      %p36 = scmp.ne.s32.totalorder %s25, %s26
      %p37 = scmp.eq.s32.totalorder %s17, 0
      %p38 = por %p36, %p37
      %p39 = scmp.ne.s32.totalorder %s25, %s26
      %p40 = scmp.eq.s32.totalorder %s18, 2
      %p41 = por %p39, %p40
      %p43 = scmp.ne.s32.totalorder %s26, %s42
      %p44 = scmp.eq.s32.totalorder %s18, 0
      %p45 = por %p43, %p44
      %s47 = sadd.s32 %s46, 1
      %p50 = scmp.eq.s32.totalorder %s12, 2
      %p51 = scmp.ne.s32.totalorder %s46, %s48
      %p52 = scmp.eq.s32.totalorder %s12, 0
      %p53 = por %p51, %p52
      %p54 = scmp.ne.s32.totalorder %s46, %s48
      %p55 = scmp.eq.s32.totalorder %s17, 2
      %p56 = por %p54, %p55
      %p57 = scmp.ne.s32.totalorder %s48, %s49
      %p58 = scmp.eq.s32.totalorder %s17, 0
      %p59 = por %p57, %p58
      %p60 = scmp.ne.s32.totalorder %s48, %s49
      %p61 = scmp.eq.s32.totalorder %s18, 2
      %p62 = por %p60, %p61
      %p64 = scmp.ne.s32.totalorder %s49, %s63
      %p65 = scmp.eq.s32.totalorder %s18, 0
      %p66 = por %p64, %p65
      %s68 = sadd.s32 %s67, 1
      %p71 = scmp.eq.s32.totalorder %s12, 2
      %p72 = scmp.ne.s32.totalorder %s67, %s69
      %p73 = scmp.eq.s32.totalorder %s12, 0
      %p74 = por %p72, %p73
      %p75 = scmp.ne.s32.totalorder %s67, %s69
      %p76 = scmp.eq.s32.totalorder %s17, 2
      %p77 = por %p75, %p76
      %p78 = scmp.ne.s32.totalorder %s69, %s70
      %p79 = scmp.eq.s32.totalorder %s17, 0
      %p80 = por %p78, %p79
      %p81 = scmp.ne.s32.totalorder %s69, %s70
      %p82 = scmp.eq.s32.totalorder %s18, 2
      %p83 = por %p81, %p82
      %p85 = scmp.ne.s32.totalorder %s70, %s84
      %p86 = scmp.eq.s32.totalorder %s18, 0
      %p87 = por %p85, %p86
      %s88 = ssub.s32 %s12, %s19
      %p89 = scmp.eq.s32.totalorder %s88, 0
      %s91 = sadd.s32 %s90, 1
      %s92 = scalar_select %p89, %s90, %s91
      %p95 = pneg %p89
      %p96 = scmp.eq.s32.totalorder %s12, 2
      %p97 = por %p95, %p96
      %p98 = scmp.ne.s32.totalorder %s90, %s93
      %p99 = scmp.eq.s32.totalorder %s12, 0
      %p100 = por %p98, %p99
      %p101 = scmp.ne.s32.totalorder %s90, %s93
      %p102 = scmp.eq.s32.totalorder %s17, 2
      %p103 = por %p101, %p102
      %p104 = scmp.ne.s32.totalorder %s93, %s94
      %p105 = scmp.eq.s32.totalorder %s17, 0
      %p106 = por %p104, %p105
      %p107 = scmp.ne.s32.totalorder %s93, %s94
      %p108 = scmp.eq.s32.totalorder %s18, 2
      %p109 = por %p107, %p108
      %p111 = scmp.ne.s32.totalorder %s94, %s110
      %p112 = scmp.eq.s32.totalorder %s18, 0
      %p113 = por %p111, %p112
      %p114 = scmp.le.s32.totalorder 1, %s12
      %p115 = scmp.lt.s32.totalorder %s12, 4
      %p116 = pnand %p114, %p115
      %p117 = pneg %p116
      // Predicated region
      $region9: #{tpu_custom_call.1} parent=5 // pred_check
        _
      $region10: #{tpu_custom_call.1} parent=5 // pred_check_branch
        %119 = sbr.rel (%p116) target = $region12
      $region11: #{tpu_custom_call.1} parent=5 // pred_region
        %s120 = ssub.s32 %s12, 1
        // Predicated region
        $region13: #{tpu_custom_call.1} parent=11 // pred_check
          %p121 = pneg %p59
        $region14: #{tpu_custom_call.1} parent=11 // pred_check_branch
          %123 = sbr.rel (%p121) target = $region16
        $region15: #{tpu_custom_call.1} parent=11 // pred_region
          _
        $region16: #{tpu_custom_call.1} parent=11 // pred_fallthru
          _
        // Predicated region
        $region17: #{tpu_custom_call.1} parent=11 // pred_check
          %p124 = pneg %p80
        $region18: #{tpu_custom_call.1} parent=11 // pred_check_branch
          %126 = sbr.rel (%p124) target = $region20
        $region19: #{tpu_custom_call.1} parent=11 // pred_region
          _
        $region20: #{tpu_custom_call.1} parent=11 // pred_fallthru
          _
      $region12: #{tpu_custom_call.1} parent=5 // pred_fallthru
        _
      %p127 = scmp.lt.s32.totalorder %s12, 3
      // Predicated region
      $region21: #{tpu_custom_call.1} parent=5 // pred_check
        %p128 = pneg %p127
      $region22: #{tpu_custom_call.1} parent=5 // pred_check_branch
        %130 = sbr.rel (%p128) target = $region24
      $region23: #{tpu_custom_call.1} parent=5 // pred_region
        // Predicated region
        $region25: #{tpu_custom_call.1} parent=23 // pred_check
          %p131 = pneg %p32
        $region26: #{tpu_custom_call.1} parent=23 // pred_check_branch
          %133 = sbr.rel (%p131) target = $region28
        $region27: #{tpu_custom_call.1} parent=23 // pred_region
          %s134 = sand.u32 %s22, 1
          %s135 = scalar_lea.sflag [#allocation3], %s134
          %s136 = sand.u32 %s22, 1
          %s137 = smul.addr %s136, 16
          %s138 = scalar_lea.vmem [#allocation2], %s137
          %s139 = smul.u32 2, %s12
          %s141 = ssub.s32 256, 256
          %142 = vsyncadd %s135, %s141
          %s143 = smul.addr %s139, 8
          %s144 = smul.addr %s143, 128
          %s145 = scalar_lea.hbm %s0, %s144
          %s146 = sshll.u32 %s138, 4
          %s147 = int_to_ptr.vmem [resolvable:$true] %s146
          %152 = dma.hbm_to_vmem [thread:$0]  %s145, 256, %s147, %s135, 1024, 128, 8
        $region28: #{tpu_custom_call.1} parent=23 // pred_fallthru
          _
      $region24: #{tpu_custom_call.1} parent=5 // pred_fallthru
        _
      %p153 = scmp.le.s32.totalorder 1, %s12
      %p154 = scmp.lt.s32.totalorder %s12, 4
      %p155 = pnand %p153, %p154
      %p156 = pneg %p155
      // Predicated region
      $region29: #{tpu_custom_call.1} parent=5 // pred_check
        _
      $region30: #{tpu_custom_call.1} parent=5 // pred_check_branch
        %158 = sbr.rel (%p155) target = $region32
      $region31: #{tpu_custom_call.1} parent=5 // pred_region
        %s159 = ssub.s32 %s12, 1
        %s160 = sand.u32 %s25, 1
        %s161 = scalar_lea.sflag [#allocation3], %s160
        %s162 = sand.u32 %s25, 1
        %s163 = smul.addr %s162, 16
        %s164 = scalar_lea.vmem [#allocation2], %s163
        // Predicated region
        $region33: #{tpu_custom_call.1} parent=31 // pred_check
          %p165 = pneg %p38
        $region34: #{tpu_custom_call.1} parent=31 // pred_check_branch
          %167 = sbr.rel (%p165) target = $region36
        $region35: #{tpu_custom_call.1} parent=31 // pred_region
          %168 = dma.done %s161, 256
        $region36: #{tpu_custom_call.1} parent=31 // pred_fallthru
          _
        %s169 = sand.u32 %s25, 1
        %s170 = scalar_lea.sflag [#allocation3], %s169
        %s171 = sand.u32 %s25, 1
        %s172 = smul.addr %s171, 16
        %s173 = scalar_lea.vmem [#allocation2], %s172
        %p174 = pneg %p38
        %p175 = pneg %p35
        %p176 = pneg %p59
        %p177 = pneg %p56
        %p178 = pneg %p80
        %p179 = pneg %p77
        %p180 = pneg %p106
        %p181 = pneg %p103
        %s182 = smul.u32 2, %s17
        %p183 = scmp.lt.s32.totalorder %s182, 5
        %s184 = scalar_select %p183, %s182, 5
        %s185 = smul.addr %s184, 8
        %s186 = scalar_lea.vmem %s3, %s185
        %s187 = smul.u32 2, %s17
        %s188 = smul.u32 2, %s17
        %p189 = scmp.lt.s32.totalorder %s188, 5
        %s190 = scalar_select %p189, %s188, 5
        %s191 = smul.addr %s190, 8
        %s192 = scalar_lea.vmem %s3, %s191
        %s193 = smul.u32 2, %s17
        %v194 = vld [vmem:[%s164] sm:$0xff]
        %v195 = vld [vmem:[%s164 + $0x8] sm:$0xff]
        %v196 = vld [vmem:[%s1] sm:$0xff]
        %v197 = vld [vmem:[%s1 + $0x8] sm:$0xff]
        %v198 = vld [vmem:[%s1 + $0x10] sm:$0xff]
        %v199 = vld [vmem:[%s1 + $0x18] sm:$0xff]
        %v200 = vld [vmem:[%s1 + $0x20] sm:$0xff]
        %v201 = vld [vmem:[%s1 + $0x28] sm:$0xff]
        %v202 = vld [vmem:[%s1 + $0x30] sm:$0xff]
        %v203 = vld [vmem:[%s1 + $0x38] sm:$0xff]
        %v204 = vld [vmem:[%s1 + $0x40] sm:$0xff]
        %v205 = vld [vmem:[%s1 + $0x48] sm:$0xff]
        %v206 = vld [vmem:[%s1 + $0x50] sm:$0xff]
        %v207 = vld [vmem:[%s1 + $0x58] sm:$0xff]
        %v208 = vld [vmem:[%s1 + $0x60] sm:$0xff]
        %v209 = vld [vmem:[%s1 + $0x68] sm:$0xff]
        %v210 = vld [vmem:[%s1 + $0x70] sm:$0xff]
        %v211 = vld [vmem:[%s1 + $0x78] sm:$0xff]
        %v212 = vld [vmem:[%s2] sm:$0x1]
        %v214 = vlaneseq
        %v215 = vshrl.u32 %v214, 7
        %v216 = vsub.s32 0, %v215
        %v217 = vrot.slane %v212, %v216
        %219 = vmatprep.subr.mxu0 0.0
        %220 = vmatpush1.msra.mxu0 %v196
        %221 = vmatprep.subr.mxu0 0.0
        %222 = vmatpush1.msra.mxu0 %v197
        %223 = vmatprep.subr.mxu0 0.0
        %224 = vmatpush1.msra.mxu0 %v198
        %225 = vmatprep.subr.mxu0 0.0
        %226 = vmatpush1.msra.mxu0 %v199
        %227 = vmatprep.subr.mxu0 0.0
        %228 = vmatpush1.msra.mxu0 %v200
        %229 = vmatprep.subr.mxu0 0.0
        %230 = vmatpush1.msra.mxu0 %v201
        %231 = vmatprep.subr.mxu0 0.0
        %232 = vmatpush1.msra.mxu0 %v202
        %233 = vmatprep.subr.mxu0 0.0
        %234 = vmatpush1.msra.mxu0 %v203
        %235 = vmatprep.subr.mxu0 0.0
        %236 = vmatpush1.msra.mxu0 %v204
        %237 = vmatprep.subr.mxu0 0.0
        %238 = vmatpush1.msra.mxu0 %v205
        %239 = vmatprep.subr.mxu0 0.0
        %240 = vmatpush1.msra.mxu0 %v206
        %241 = vmatprep.subr.mxu0 0.0
        %242 = vmatpush1.msra.mxu0 %v207
        %243 = vmatprep.subr.mxu0 0.0
        %244 = vmatpush1.msra.mxu0 %v208
        %245 = vmatprep.subr.mxu0 0.0
        %246 = vmatpush1.msra.mxu0 %v209
        %247 = vmatprep.subr.mxu0 0.0
        %248 = vmatpush1.msra.mxu0 %v210
        %249 = vmatprep.subr.mxu0 0.0
        %250 = vmatpush1.msra.mxu0 %v211
        %251 = vmatprep.subr.mxu0 0.0
        %252 = vmatpush1.msra.mxu0 0.0
        %253 = vmatprep.subr.mxu0 0.0
        %254 = vmatpush1.msra.mxu0 0.0
        %255 = vmatprep.subr.mxu0 0.0
        %256 = vmatpush1.msra.mxu0 0.0
        %257 = vmatprep.subr.mxu0 0.0
        %258 = vmatpush1.msra.mxu0 0.0
        %259 = vmatprep.subr.mxu0 0.0
        %260 = vmatpush1.msra.mxu0 0.0
        %261 = vmatprep.subr.mxu0 0.0
        %262 = vmatpush1.msra.mxu0 0.0
        %263 = vmatprep.subr.mxu0 0.0
        %264 = vmatpush1.msra.mxu0 0.0
        %265 = vmatprep.subr.mxu0 0.0
        %266 = vmatpush1.msra.mxu0 0.0
        %267 = vmatprep.subr.mxu0 0.0
        %268 = vmatpush1.msra.mxu0 0.0
        %269 = vmatprep.subr.mxu0 0.0
        %270 = vmatpush1.msra.mxu0 0.0
        %271 = vmatprep.subr.mxu0 0.0
        %272 = vmatpush1.msra.mxu0 0.0
        %273 = vmatprep.subr.mxu0 0.0
        %274 = vmatpush1.msra.mxu0 0.0
        %275 = vmatprep.subr.mxu0 0.0
        %276 = vmatpush1.msra.mxu0 0.0
        %277 = vmatprep.subr.mxu0 0.0
        %278 = vmatpush1.msra.mxu0 0.0
        %279 = vmatprep.subr.mxu0 0.0
        %280 = vmatpush1.msra.mxu0 0.0
        %281 = vmatprep.subr.mxu0 0.0
        %282 = vmatpush1.msra.mxu0 0.0
        %283 = vmatprep.mubr.f32.mxu0 0.0
        %284 = vmatmul.mubr.f32.gmra.mrb[0].mxu0 %v194
        %v285 = vpop.f32.mrb[0].mxu0
        %v286 = vadd.f32 %v217, %v285
        %v287 = vpop.f32.mrb[0].mxu0
        %288 = vmatprep.mubr.f32.mxu0 0.0
        %289 = vmatmul.mubr.f32.gmra.mrb[0].mxu0 %v195
        %v290 = vpop.f32.mrb[0].mxu0
        %v291 = vadd.f32 %v217, %v290
        %v292 = vpop.f32.mrb[0].mxu0
        %293 = vdwg.mxu0
        %vm294 = vcmask 15360
        %v295 = vsel %vm294, %v286, -inf
        %296 = vmax.xlane.f32.xlu0 %v295
        %v297 = vpop.xlane.xlu0 %296
        %v298 = vsel %vm294, %v291, -inf
        %299 = vmax.xlane.f32.xlu0 %v298
        %v300 = vpop.xlane.xlu0 %299
        %v301 = vsub.f32 %v286, %v297
        %v302 = vsub.f32 %v291, %v300
        %v303 = vmul.f32 %v301, 1.442695
        %v304 = vpow.pop %v303
        %v305 = vmul.f32 %v302, 1.442695
        %v306 = vpow.pop %v305
        %v307 = vsel %vm294, %v304, 0.0
        %308 = vadd.xlane.f32.xlu0 %v307
        %v309 = vpop.xlane.xlu0 %308
        %v310 = vsel %vm294, %v306, 0.0
        %311 = vadd.xlane.f32.xlu0 %v310
        %v312 = vpop.xlane.xlu0 %311
        %v313 = vlog2.pop %v309
        %v314 = vmul.f32 %v313, 0.6931472
        %v315 = vlog2.pop %v312
        %v316 = vmul.f32 %v315, 0.6931472
        %v317 = vsub.f32 %v301, %v314
        %v318 = vsub.f32 %v302, %v316
        %319 = vst.msk [vmem:[%s192] sm:$0xff] %vm294, %v317
        %320 = vst.msk [vmem:[%s192 + $0x8] sm:$0xff] %vm294, %v318
        %s321 = smul.u32 2, %s17
        %p322 = scmp.lt.s32.totalorder %s321, 5
        %s323 = scalar_select %p322, %s321, 5
        %s324 = smul.addr %s323, 8
        %s325 = scalar_lea.vmem %s3, %s324
        // Predicated region
        $region37: #{tpu_custom_call.1} parent=31 // pred_check
          %p326 = pneg %p103
        $region38: #{tpu_custom_call.1} parent=31 // pred_check_branch
          %328 = sbr.rel (%p326) target = $region40
        $region39: #{tpu_custom_call.1} parent=31 // pred_region
          %s329 = smul.u32 2, %s17
        $region40: #{tpu_custom_call.1} parent=31 // pred_fallthru
          _
      $region32: #{tpu_custom_call.1} parent=5 // pred_fallthru
        _
      %p330 = scmp.le.s32.totalorder 2, %s12
      // Predicated region
      $region41: #{tpu_custom_call.1} parent=5 // pred_check
        %p331 = pneg %p330
      $region42: #{tpu_custom_call.1} parent=5 // pred_check_branch
        %333 = sbr.rel (%p331) target = $region44
      $region43: #{tpu_custom_call.1} parent=5 // pred_region
        %s334 = ssub.s32 %s12, 2
        // Predicated region
        $region45: #{tpu_custom_call.1} parent=43 // pred_check
          %p335 = pneg %p109
        $region46: #{tpu_custom_call.1} parent=43 // pred_check_branch
          %337 = sbr.rel (%p335) target = $region48
        $region47: #{tpu_custom_call.1} parent=43 // pred_region
          %s338 = smul.u32 2, %s18
          %p339 = scmp.lt.s32.totalorder %s338, 5
          %s340 = scalar_select %p339, %s338, 5
          %s341 = smul.addr %s340, 8
          %s342 = scalar_lea.vmem %s3, %s341
        $region48: #{tpu_custom_call.1} parent=43 // pred_fallthru
          _
      $region44: #{tpu_custom_call.1} parent=5 // pred_fallthru
        _
    $region6: #{tpu_custom_call.1} parent=1 // loop_footer
      %s16 = sadd.s32 1, %s12
    $region7: #{tpu_custom_call.1} parent=1 // loop_footer_branch
      %11 = sbr.rel target = $region3
    $region8: #{tpu_custom_call.1} parent=1 // loop_exit
      _
    %343 = vsyncpa [#allocation3], 1
    %s344 = scalar_lea.sflag [#allocation3], 1
    %345 = vsyncpa %s344, 1

</llo_original>
